<compile_context>
chip_gen: v6e
topology: v6e:2x2x1
jax: 0.10.0
libtpu: 0.0.40
codegen_flags: <defaults>
</compile_context>

<pallas_src>
import math

import jax
import jax.numpy as jnp
from jax.experimental import pallas as pl
from jax.experimental.pallas import tpu as pltpu


def _build_pe_table(d_model: int, max_len: int = 5000,
                    dtype=jnp.float32) -> jnp.ndarray:
    """Sinusoidal positional-encoding table, shape (max_len, d_model)."""
    position = jnp.arange(0, max_len, dtype=jnp.float32)[:, None]           # (max_len, 1)
    div_term = jnp.exp(
        jnp.arange(0, d_model, 2, dtype=jnp.float32) * (-math.log(10000.0) / d_model)
    )                                                                        # (ceil(d/2),)
    pe = jnp.zeros((max_len, d_model), dtype=jnp.float32)
    pe = pe.at[:, 0::2].set(jnp.sin(position * div_term))
    # Guard for odd d_model: cos fills only d_model//2 columns.
    pe = pe.at[:, 1::2].set(jnp.cos(position * div_term[: d_model // 2]))
    return pe.astype(dtype)


def _add_pe_kernel(x_ref, pe_ref, o_ref):
    # x_ref: (TB, TN), pe_ref: (1, TN) -> broadcast add over batch sublanes.
    o_ref[...] = (x_ref[...] + pe_ref[...]).astype(o_ref.dtype)


def _block_target_bytes() -> int:
    """Per-generation x-block size target (HBM roofline plateau vs grid-step overhead)."""
    try:
        kind = jax.devices()[0].device_kind.lower()
    except Exception:  # pragma: no cover - be robust on exotic backends
        kind = ""
    if "v7" in kind:
        # ~3.2 TB/s HBM: a 2 MiB step is only ~1.25 us of traffic vs ~0.35 us
        # fixed overhead; 4 MiB halves that overhead and still fits VMEM.
        return 4 * 1024 * 1024
    return 2 * 1024 * 1024


def _round_tile(dim: int, unit: int, max_tile: int) -> int:
    """Tile size <= max_tile that is a multiple of `unit`, or the full dim if dim <= unit."""
    if dim <= unit:
        return dim                       # full-dim block is always legal
    t = min(max_tile, dim)
    t = (t // unit) * unit
    return max(t, unit)


def _pick_tiles(B: int, N: int, itemsize: int, block_target: int):
    # Sublane unit matches the dtype's native packed tile: (8,128) f32,
    # (16,128) bf16, (32,128) int8/fp8 -> unmasked stores, no packing fixups.
    sub_unit = {4: 8, 2: 16, 1: 32}.get(itemsize, 8)
    row_bytes = N * itemsize

    if row_bytes <= block_target // 8:
        # Full-row path: contiguous per-block DMA, pe fetched once for the
        # whole kernel, grid tiles only over batch.
        TN = N
        max_rows = max(block_target // max(row_bytes, 1), sub_unit)
        TB = _round_tile(B, sub_unit, max_rows)
    else:
        # Tile the lane dimension in multiples of 128; cap the batch tile so
        # the block stays near the target size.  cdiv grid masks the single
        # ragged tail tile instead of blowing up to a full-dim block.
        TB = _round_tile(B, sub_unit, 256)
        max_lanes = max(block_target // (TB * itemsize), 128)
        TN = _round_tile(N, 128, max_lanes)
    return TB, TN


def positional_encoding_forward(x: jnp.ndarray, pe_table: jnp.ndarray) -> jnp.ndarray:
    """x: (B, S, D).  Returns x + pe[:S, :] broadcast over batch (same dtype as x)."""
    B, S, D = x.shape
    if S > pe_table.shape[0]:
        raise ValueError(f"sequence length {S} exceeds max_len {pe_table.shape[0]}")
    if D != pe_table.shape[1]:
        raise ValueError(f"d_model mismatch: {D} vs {pe_table.shape[1]}")

    pe_slice = pe_table[:S, :].astype(x.dtype)      # cast once; add stays in x.dtype

    # Fold (S, D) into one lane-dense last dimension.
    N = S * D
    x2 = x.reshape(B, N)
    pe2 = pe_slice.reshape(1, N)

    itemsize = jnp.dtype(x.dtype).itemsize
    TB, TN = _pick_tiles(B, N, itemsize, _block_target_bytes())

    # Outer axis = lane/sequence tiles, inner axis = batch tiles: the pe block
    # index is constant over the inner axis -> each pe tile is fetched once.
    grid = (pl.cdiv(N, TN), pl.cdiv(B, TB))

    out2 = pl.pallas_call(
        _add_pe_kernel,
        out_shape=jax.ShapeDtypeStruct((B, N), x.dtype),
        grid_spec=pltpu.PrefetchScalarGridSpec(
            num_scalar_prefetch=0,
            grid=grid,
            in_specs=[
                pl.BlockSpec((TB, TN), lambda n, b: (b, n)),   # x
                pl.BlockSpec((1, TN), lambda n, b: (0, n)),    # pe (broadcast over batch)
            ],
            out_specs=pl.BlockSpec((TB, TN), lambda n, b: (b, n)),
        ),
        compiler_params=pltpu.CompilerParams(
            # Both axes independent -> shard across v7x's 2 TensorCores.
            dimension_semantics=("parallel", "parallel"),
            # Explicit headroom; double-buffered working set stays under this
            # on all generations (v7x physical = 64 MiB).
            vmem_limit_bytes=32 * 1024 * 1024,
        ),
        # Purely bandwidth-bound: lets XLA schedule/overlap neighbouring ops.
        cost_estimate=pl.CostEstimate(
            flops=B * N,
            transcendentals=0,
            bytes_accessed=(2 * B * N + N) * itemsize,
        ),
    )(x2, pe2)

    return out2.reshape(B, S, D)


if __name__ == "__main__":
    d_model = 8
    max_len = 5000
    B, S = 2, 8

    key = jax.random.PRNGKey(0)
    x = jax.random.normal(key, (B, S, d_model), dtype=jnp.float32)

    pe_table = _build_pe_table(d_model, max_len)

    y = positional_encoding_forward(x, pe_table)
    y = jax.block_until_ready(y)

    # Reference check (pure JAX) to confirm semantics match the PyTorch module.
    y_ref = x + pe_table[None, :S, :]
    assert y.shape == x.shape and y.dtype == x.dtype
    assert jnp.allclose(y, y_ref, atol=1e-6, rtol=1e-6)

    print("KERNEL_OK")
</pallas_src>

<mosaic_0001>
module attributes {stable_mosaic.version = 11 : i64} {
  func.func @_add_pe_kernel(%arg0: i32, %arg1: i32, %arg2: memref<2x64xf32, #tpu.memory_space<vmem>>, %arg3: memref<1x64xf32, #tpu.memory_space<vmem>>, %arg4: memref<2x64xf32, #tpu.memory_space<vmem>>) attributes {dimension_semantics = [#tpu.dimension_semantics<parallel>, #tpu.dimension_semantics<parallel>], iteration_bounds = array<i64: 1, 1>, scalar_prefetch = 0 : i64, scratch_operands = 0 : i64, tpu.core_type = #tpu.core_type<tc>, window_params = [{transform_indices = @transform_0, window_bounds = array<i64: 2, 64>}, {transform_indices = @transform_1, window_bounds = array<i64: 1, 64>}, {transform_indices = @transform_2, window_bounds = array<i64: 2, 64>}]} {
    %c0 = arith.constant 0 : index
    %c0_0 = arith.constant 0 : index
    %0 = vector.load %arg2[%c0, %c0_0] : memref<2x64xf32, #tpu.memory_space<vmem>>, vector<2x64xf32>
    %c0_1 = arith.constant 0 : index
    %c0_2 = arith.constant 0 : index
    %1 = vector.load %arg3[%c0_1, %c0_2] : memref<1x64xf32, #tpu.memory_space<vmem>>, vector<1x64xf32>
    %2 = vector.broadcast %1 : vector<1x64xf32> to vector<2x64xf32>
    %3 = arith.addf %0, %2 : vector<2x64xf32>
    %c0_3 = arith.constant 0 : index
    %c0_4 = arith.constant 0 : index
    %4 = vector.load %arg4[%c0_3, %c0_4] : memref<2x64xf32, #tpu.memory_space<vmem>>, vector<2x64xf32>
    tpu.vector_store %arg4[%c0_3, %c0_4], %3 {strides = array<i32>} : memref<2x64xf32, #tpu.memory_space<vmem>>, vector<2x64xf32>,
    return
  }
  func.func @transform_0(%arg0: i32, %arg1: i32) -> (i32, i32) {
    %c0_i32 = arith.constant 0 : i32
    return %arg1, %arg0 : i32, i32
  }
  func.func @transform_1(%arg0: i32, %arg1: i32) -> (i32, i32) {
    %c0_i32 = arith.constant 0 : i32
    %c0_i32_0 = arith.constant 0 : i32
    return %c0_i32, %arg0 : i32, i32
  }
  func.func @transform_2(%arg0: i32, %arg1: i32) -> (i32, i32) {
    %c0_i32 = arith.constant 0 : i32
    return %arg1, %arg0 : i32, i32
  }
}

</mosaic_0001>

<llo_original>
// kernel: tpu_custom_call.1
$region0: #{tpu_custom_call.1}
  #allocation0 [shape = 'u32[]', space=smem, size = 0x4, offset = 0x4, fixed_abs, tag = 'smem constant byte address 0x4 - core index']
  #allocation1 [shape = 'u32[144,128]{1,0:T(1,128)}', space=vmem, size = 0x12000, scoped, tag = 'internal scratch']
  %s0 = inlined_call_operand.hbm [shape: f32[2,64], index: 0, kind: input, shape index: {}]
  %s1 = inlined_call_operand.vmem [shape: f32[1,64], index: 1, kind: input, shape index: {}]
  %s2 = inlined_call_operand.hbm [shape: f32[2,64], index: 2, kind: output, shape index: {}]
  %s3 = sld [smem:[#allocation0]]
  $region22: #{tpu_custom_call.1} parent=0
    _
  %s5 = ssub.s32 1, %s3
  %s6 = scalar_select 0, %s5, %s3
  $region1: #{tpu_custom_call.1} parent=0
    #allocation2 [shape = 'u8[1024]{0}', space=vmem, size = 0x400, scoped, tag = 'input window, operand 0, single buffered']
    #allocation3 [shape = 's32[1]{0}', space=sflag, size = 0x4, scoped, tag = 'scoped memory for tpu_custom_call.1']
    #allocation4 [shape = 's32[1]{0}', space=sflag, size = 0x4, scoped, tag = 'scoped memory for tpu_custom_call.1']
    #allocation5 [shape = 'u8[1024]{0}', space=vmem, size = 0x400, scoped, tag = 'output window, operand 0, single buffered']
    %7 = vsyncpa [#allocation3], 0
    %8 = vsyncpa [#allocation4], 0
    // Predicated region
    $region2: #{tpu_custom_call.1} parent=1 // pred_check
      _
    $region3: #{tpu_custom_call.1} parent=1 // pred_check_branch
      %10 = sbr.rel (0) target = $region5
    $region4: #{tpu_custom_call.1} parent=1 // pred_region
      %s12 = ssub.s32 32, 32
      %13 = vsyncadd [#allocation3], %s12
      %s15 = sshll.u32 [#allocation2], 4
      %s16 = int_to_ptr.vmem [resolvable:$true] %s15
      %18 = dma.hbm_to_vmem [thread:$0]  %s0, 32, %s16, [#allocation3]
    $region5: #{tpu_custom_call.1} parent=1 // pred_fallthru
      _
    // Predicated region
    $region6: #{tpu_custom_call.1} parent=1 // pred_check
      _
    $region7: #{tpu_custom_call.1} parent=1 // pred_check_branch
      %20 = sbr.rel (0) target = $region9
    $region8: #{tpu_custom_call.1} parent=1 // pred_region
      _
    $region9: #{tpu_custom_call.1} parent=1 // pred_fallthru
      _
    // Predicated region
    $region10: #{tpu_custom_call.1} parent=1 // pred_check
      _
    $region11: #{tpu_custom_call.1} parent=1 // pred_check_branch
      %22 = sbr.rel (0) target = $region13
    $region12: #{tpu_custom_call.1} parent=1 // pred_region
      %23 = dma.done [#allocation3], 32
    $region13: #{tpu_custom_call.1} parent=1 // pred_fallthru
      _
    %v24 = vld [vmem:[#allocation2] sm:$0x3]
    %v25 = vld [vmem:[%s1] sm:$0x1]
    %v27 = vlaneseq
    %v28 = vshrl.u32 %v27, 7
    %v29 = vsub.s32 0, %v28
    %v30 = vrot.slane %v25, %v29
    %v32 = vadd.f32 %v24, %v30
    %vm33 = vcmask 517120
    %34 = vst.msk [vmem:[#allocation5] sm:$0x3] %vm33, %v32
    // Predicated region
    $region14: #{tpu_custom_call.1} parent=1 // pred_check
      _
    $region15: #{tpu_custom_call.1} parent=1 // pred_check_branch
      %36 = sbr.rel (0) target = $region17
    $region16: #{tpu_custom_call.1} parent=1 // pred_region
      %s38 = ssub.s32 32, 32
      %39 = vsyncadd [#allocation4], %s38
      %s41 = sshll.u32 [#allocation5], 4
      %s42 = int_to_ptr.vmem [resolvable:$true] %s41
      %44 = dma.vmem_to_hbm [thread:$0]  %s42, 32, %s2, [#allocation4]
    $region17: #{tpu_custom_call.1} parent=1 // pred_fallthru
      _
    // Predicated region
    $region18: #{tpu_custom_call.1} parent=1 // pred_check
      _
    $region19: #{tpu_custom_call.1} parent=1 // pred_check_branch
      %46 = sbr.rel (0) target = $region21
    $region20: #{tpu_custom_call.1} parent=1 // pred_region
      %47 = dma.done [#allocation4], 32
    $region21: #{tpu_custom_call.1} parent=1 // pred_fallthru
      _
    %48 = vsyncpa [#allocation3], 1
    %49 = vsyncpa [#allocation4], 1

</llo_original>
